<compile_context>
chip_gen: v5e
topology: v5e:2x2
jax: 0.10.0
libtpu: 0.0.40
codegen_flags: <defaults>
</compile_context>

<pallas_src>
import functools

import jax
import jax.numpy as jnp
from jax.experimental import pallas as pl
from jax.experimental.pallas import tpu as pltpu


# ---------------------------------------------------------------------------
# General SNorm kernel: x (B, C, N, T) -> normalize over N, affine per channel.
# Kernel layout: sublanes = nodes (reduction axis), lanes = flattened (b, c, t).
# ---------------------------------------------------------------------------
def _snorm_kernel(g_ref, b_ref, x_ref, o_ref):
    x = x_ref[...].astype(jnp.float32)                  # (N, lane_block)
    n = x.shape[0]

    mean = jnp.mean(x, axis=0, keepdims=True)           # (1, lane_block)
    diff = x - mean
    # Unbiased variance (torch.var(..., unbiased=True)); precondition: N >= 2.
    var = jnp.sum(diff * diff, axis=0, keepdims=True) / jnp.float32(n - 1)

    # Fold gamma into the inverse std: saves a full (N, L) VPU multiply.
    scale = jax.lax.rsqrt(var + jnp.float32(1e-5)) * g_ref[...]    # (1, lane_block)
    o_ref[...] = (diff * scale + b_ref[...]).astype(o_ref.dtype)


def snorm(x, gamma, beta, *, lane_block=None, vmem_limit_bytes=48 * 1024 * 1024):
    """SNorm: x (B, C, N, T); gamma, beta (C,).  Returns (B, C, N, T)."""
    B, C, N, T = x.shape
    L = B * C * T

    # Lane-dense layout: nodes -> sublanes, (b, c, t) -> lanes.
    x2 = jnp.transpose(x, (2, 0, 1, 3)).reshape(N, L)
    # gamma/beta expanded to per-lane vectors (gamma[c] for each (b, c, t) lane).
    g2 = jnp.tile(jnp.repeat(gamma.astype(jnp.float32), T), B).reshape(1, L)
    b2 = jnp.tile(jnp.repeat(beta.astype(jnp.float32), T), B).reshape(1, L)

    if lane_block is None:
        # ~4 MiB per input tile; double-buffered input + output ~= 16 MiB VMEM,
        # well under the v7x 64 MiB physical limit (and v5e/v6e 128 MiB).
        lane_block = max(128, ((4 * 1024 * 1024) // (4 * N)) // 128 * 128)
    if lane_block >= L:
        lane_block = L                        # single block spanning the lane dim
    else:
        lane_block = max(128, (lane_block // 128) * 128)   # keep blocks lane-aligned
    grid = (pl.cdiv(L, lane_block),)

    out2 = pl.pallas_call(
        _snorm_kernel,
        out_shape=jax.ShapeDtypeStruct((N, L), x.dtype),
        grid_spec=pltpu.PrefetchScalarGridSpec(
            num_scalar_prefetch=0,
            grid=grid,
            in_specs=[
                pl.BlockSpec((1, lane_block), lambda j: (0, j)),   # gamma lanes
                pl.BlockSpec((1, lane_block), lambda j: (0, j)),   # beta lanes
                # NOTE: if DMA is still exposed after enlarging blocks, add
                # pipeline_mode=pl.Buffered(3) here (sweep depth 2 vs 3).
                pl.BlockSpec((N, lane_block), lambda j: (0, j)),   # x
            ],
            out_specs=pl.BlockSpec((N, lane_block), lambda j: (0, j)),
        ),
        compiler_params=pltpu.CompilerParams(
            dimension_semantics=("parallel",),        # shardable across v7x's 2 TCs
            vmem_limit_bytes=vmem_limit_bytes,
        ),
    )(g2, b2, x2)

    return jnp.transpose(out2.reshape(N, B, C, T), (1, 2, 0, 3))


# ---------------------------------------------------------------------------
# Fused STNorm kernel: x (N, T) -> Identity / SNorm / TNorm -> Linear(3, 1).
# ---------------------------------------------------------------------------
def _stnorm_kernel(scal_ref, tn_g_ref, tn_b_ref, tn_rm_ref, tn_rv_ref,
                   x_ref, o_ref, *, training):
    x = x_ref[...].astype(jnp.float32)                  # (N, T)
    n_nodes = x.shape[0]
    eps = jnp.float32(1e-5)

    sn_gamma = scal_ref[0]
    sn_beta = scal_ref[1]
    w_id = scal_ref[2]
    w_sn = scal_ref[3]
    w_tn = scal_ref[4]
    fuse_b = scal_ref[5]

    # ---- SNorm: normalize across nodes (sublanes), unbiased variance ----
    mean_n = jnp.mean(x, axis=0, keepdims=True)                       # (1, T)
    dn = x - mean_n
    var_n = jnp.sum(dn * dn, axis=0, keepdims=True) / jnp.float32(n_nodes - 1)
    out_sn = dn * (jax.lax.rsqrt(var_n + eps) * sn_gamma) + sn_beta   # (N, T)

    # ---- TNorm: normalize across time (lanes), per-node affine ----
    tn_g = tn_g_ref[...].astype(jnp.float32)                          # (N, 1)
    tn_b = tn_b_ref[...].astype(jnp.float32)                          # (N, 1)
    if training:
        # Batch statistics over (batch, time); batch == 1 here.  Biased var.
        mean_t = jnp.mean(x, axis=1, keepdims=True)                   # (N, 1)
        dt = x - mean_t
        var_t = jnp.mean(dt * dt, axis=1, keepdims=True)
        # TODO(synk): running_mean/running_var buffer updates (training-time
        # side effect of TNorm) are not materialized; only the forward output.
    else:
        mean_t = tn_rm_ref[...].astype(jnp.float32)                   # (N, 1)
        var_t = tn_rv_ref[...].astype(jnp.float32)
        dt = x - mean_t
    out_tn = dt * (jax.lax.rsqrt(var_t + eps) * tn_g) + tn_b          # (N, T)

    # ---- fuse: Linear(3, 1) over stacked [identity, SNorm, TNorm] ----
    fused = x * w_id + out_sn * w_sn + out_tn * w_tn + fuse_b
    o_ref[...] = fused.astype(o_ref.dtype)


def stnorm_forward(x, params, *, training=True):
    """STNorm(use_sn=True, use_tn=True) forward for x of shape (n_nodes, n_timesteps)."""
    N, T = x.shape
    scalars = jnp.stack([
        params["sn_gamma"], params["sn_beta"],
        params["fuse_w"][0], params["fuse_w"][1], params["fuse_w"][2],
        params["fuse_b"],
    ]).astype(jnp.float32)                                            # (6,)

    vmem = pl.BlockSpec(memory_space=pltpu.MemorySpace.VMEM)
    return pl.pallas_call(
        functools.partial(_stnorm_kernel, training=training),
        out_shape=jax.ShapeDtypeStruct((N, T), x.dtype),
        in_specs=[
            pl.BlockSpec(memory_space=pltpu.MemorySpace.SMEM),        # scalars (6,)
            vmem, vmem,                                               # tn gamma/beta (N,1)
            vmem, vmem,                                               # running mean/var (N,1)
            vmem,                                                     # x (N,T)
        ],
        out_specs=vmem,
    )(scalars, params["tn_gamma"], params["tn_beta"],
      params["tn_running_mean"], params["tn_running_var"], x)


# ---------------------------------------------------------------------------
# Pure-JAX references.
# ---------------------------------------------------------------------------
def _snorm_ref(x, gamma, beta):
    mean = jnp.mean(x, axis=2, keepdims=True)
    var = jnp.var(x, axis=2, keepdims=True, ddof=1)
    xn = (x - mean) / jnp.sqrt(var + 1e-5)
    return xn * gamma.reshape(1, -1, 1, 1) + beta.reshape(1, -1, 1, 1)


def _stnorm_ref(x, params, training=True):
    N, T = x.shape
    x4 = x.reshape(1, 1, N, T)
    out_id = x4
    out_sn = _snorm_ref(x4, params["sn_gamma"].reshape(1), params["sn_beta"].reshape(1))
    if training:
        mean = jnp.mean(x4, axis=(0, 3), keepdims=True)
        var = jnp.var(x4, axis=(0, 3), keepdims=True)                 # biased
    else:
        mean = params["tn_running_mean"].reshape(1, 1, N, 1)
        var = params["tn_running_var"].reshape(1, 1, N, 1)
    out_tn = ((x4 - mean) / jnp.sqrt(var + 1e-5)
              * params["tn_gamma"].reshape(1, 1, N, 1)
              + params["tn_beta"].reshape(1, 1, N, 1))
    stacked = jnp.stack([out_id, out_sn, out_tn], axis=-1)            # (1,1,N,T,3)
    out = jnp.sum(stacked * params["fuse_w"].reshape(1, 1, 1, 1, 3), axis=-1)
    out = out + params["fuse_b"]
    return out.reshape(N, T)


if __name__ == "__main__":
    key = jax.random.PRNGKey(0)
    ks = jax.random.split(key, 12)

    # -------------------------------------------------------------------
    # Full STNorm forward (module spec): input (n_nodes, n_timesteps).
    # PyTorch init would be gamma=1, beta=0, fuse=1/3, bias=0; randomized
    # values are used so parameter handling is actually exercised.
    # -------------------------------------------------------------------
    N, T = 16, 16
    x_st = jax.random.normal(ks[0], (N, T), dtype=jnp.float32)
    params = {
        "sn_gamma": 1.0 + 0.1 * jax.random.normal(ks[1], (), jnp.float32),
        "sn_beta": 0.1 * jax.random.normal(ks[2], (), jnp.float32),
        "tn_gamma": 1.0 + 0.1 * jax.random.normal(ks[3], (N, 1), jnp.float32),
        "tn_beta": 0.1 * jax.random.normal(ks[4], (N, 1), jnp.float32),
        "tn_running_mean": 0.1 * jax.random.normal(ks[5], (N, 1), jnp.float32),
        "tn_running_var": jax.random.uniform(ks[6], (N, 1), jnp.float32, 0.5, 1.5),
        "fuse_w": jnp.full((3,), 1.0 / 3.0, jnp.float32),
        "fuse_b": jnp.zeros((), jnp.float32),
    }

    out_train = jax.block_until_ready(stnorm_forward(x_st, params, training=True))
    out_eval = jax.block_until_ready(stnorm_forward(x_st, params, training=False))
    assert out_train.shape == (N, T) and out_eval.shape == (N, T)
    assert jnp.allclose(out_train, _stnorm_ref(x_st, params, training=True),
                        atol=1e-4, rtol=1e-4), "STNorm train-mode mismatch"
    assert jnp.allclose(out_eval, _stnorm_ref(x_st, params, training=False),
                        atol=1e-4, rtol=1e-4), "STNorm eval-mode mismatch"

    # -------------------------------------------------------------------
    # Standalone general SNorm kernel: the shape from the perf review, plus a
    # larger case that exercises the multi-block lane-tiled grid.
    # -------------------------------------------------------------------
    B, C, Ns, Ts = 2, 4, 16, 16
    xs = jax.random.normal(ks[7], (B, C, Ns, Ts), dtype=jnp.float32)
    gs = 1.0 + 0.1 * jax.random.normal(ks[8], (C,), jnp.float32)
    bs = 0.1 * jax.random.normal(ks[9], (C,), jnp.float32)
    out_s = jax.block_until_ready(snorm(xs, gs, bs))
    assert jnp.allclose(out_s, _snorm_ref(xs, gs, bs), atol=1e-4, rtol=1e-4), \
        "SNorm mismatch (small)"

    B2, C2, N2, T2 = 4, 8, 64, 48
    x2 = jax.random.normal(ks[10], (B2, C2, N2, T2), dtype=jnp.float32)
    g2 = 1.0 + 0.1 * jax.random.normal(ks[11], (C2,), jnp.float32)
    b2 = 0.1 * jax.random.normal(ks[2], (C2,), jnp.float32)
    out_l = jax.block_until_ready(snorm(x2, g2, b2, lane_block=512))
    assert jnp.allclose(out_l, _snorm_ref(x2, g2, b2), atol=1e-4, rtol=1e-4), \
        "SNorm mismatch (large)"

    print("KERNEL_OK")
</pallas_src>

<mosaic_0001>
module attributes {stable_mosaic.version = 11 : i64} {
  func.func @_stnorm_kernel(%arg0: memref<6xf32, #tpu.memory_space<smem>>, %arg1: memref<16x1xf32, #tpu.memory_space<vmem>>, %arg2: memref<16x1xf32, #tpu.memory_space<vmem>>, %arg3: memref<16x1xf32, #tpu.memory_space<vmem>>, %arg4: memref<16x1xf32, #tpu.memory_space<vmem>>, %arg5: memref<16x16xf32, #tpu.memory_space<vmem>>, %arg6: memref<16x16xf32, #tpu.memory_space<vmem>>) attributes {dimension_semantics = [], scalar_prefetch = 0 : i64, scratch_operands = 0 : i64, tpu.core_type = #tpu.core_type<tc>} {
    %c0 = arith.constant 0 : index
    %c0_0 = arith.constant 0 : index
    %0 = vector.load %arg5[%c0, %c0_0] : memref<16x16xf32, #tpu.memory_space<vmem>>, vector<16x16xf32>
    %c0_1 = arith.constant 0 : index
    %1 = memref.load %arg0[%c0_1] : memref<6xf32, #tpu.memory_space<smem>>
    %c1 = arith.constant 1 : index
    %2 = memref.load %arg0[%c1] : memref<6xf32, #tpu.memory_space<smem>>
    %c2 = arith.constant 2 : index
    %3 = memref.load %arg0[%c2] : memref<6xf32, #tpu.memory_space<smem>>
    %c3 = arith.constant 3 : index
    %4 = memref.load %arg0[%c3] : memref<6xf32, #tpu.memory_space<smem>>
    %c4 = arith.constant 4 : index
    %5 = memref.load %arg0[%c4] : memref<6xf32, #tpu.memory_space<smem>>
    %c5 = arith.constant 5 : index
    %6 = memref.load %arg0[%c5] : memref<6xf32, #tpu.memory_space<smem>>
    %cst = arith.constant dense<0.000000e+00> : vector<16xf32>
    %7 = vector.multi_reduction <add>, %0, %cst [0] : vector<16x16xf32> to vector<16xf32>
    %8 = vector.shape_cast %7 : vector<16xf32> to vector<1x16xf32>
    %cst_2 = arith.constant 1.600000e+01 : f32
    %9 = vector.broadcast %cst_2 : f32 to vector<1x16xf32>
    %10 = arith.divf %8, %9 : vector<1x16xf32>
    %11 = vector.broadcast %10 : vector<1x16xf32> to vector<16x16xf32>
    %12 = arith.subf %0, %11 : vector<16x16xf32>
    %13 = arith.mulf %12, %12 : vector<16x16xf32>
    %cst_3 = arith.constant dense<0.000000e+00> : vector<16xf32>
    %14 = vector.multi_reduction <add>, %13, %cst_3 [0] : vector<16x16xf32> to vector<16xf32>
    %15 = vector.shape_cast %14 : vector<16xf32> to vector<1x16xf32>
    %cst_4 = arith.constant 1.500000e+01 : f32
    %16 = vector.broadcast %cst_4 : f32 to vector<1x16xf32>
    %17 = arith.divf %15, %16 : vector<1x16xf32>
    %cst_5 = arith.constant 9.99999974E-6 : f32
    %18 = vector.broadcast %cst_5 : f32 to vector<1x16xf32>
    %19 = arith.addf %17, %18 : vector<1x16xf32>
    %20 = math.rsqrt %19 : vector<1x16xf32>
    %21 = vector.broadcast %1 : f32 to vector<1x16xf32>
    %22 = arith.mulf %20, %21 : vector<1x16xf32>
    %23 = vector.broadcast %22 : vector<1x16xf32> to vector<16x16xf32>
    %24 = arith.mulf %12, %23 : vector<16x16xf32>
    %25 = vector.broadcast %2 : f32 to vector<16x16xf32>
    %26 = arith.addf %24, %25 : vector<16x16xf32>
    %c0_6 = arith.constant 0 : index
    %c0_7 = arith.constant 0 : index
    %27 = vector.load %arg1[%c0_6, %c0_7] : memref<16x1xf32, #tpu.memory_space<vmem>>, vector<16x1xf32>
    %c0_8 = arith.constant 0 : index
    %c0_9 = arith.constant 0 : index
    %28 = vector.load %arg2[%c0_8, %c0_9] : memref<16x1xf32, #tpu.memory_space<vmem>>, vector<16x1xf32>
    %cst_10 = arith.constant dense<0.000000e+00> : vector<16xf32>
    %29 = vector.multi_reduction <add>, %0, %cst_10 [1] : vector<16x16xf32> to vector<16xf32>
    %30 = vector.shape_cast %29 : vector<16xf32> to vector<16x1xf32>
    %cst_11 = arith.constant 1.600000e+01 : f32
    %31 = vector.broadcast %cst_11 : f32 to vector<16x1xf32>
    %32 = arith.divf %30, %31 : vector<16x1xf32>
    %33 = vector.broadcast %32 : vector<16x1xf32> to vector<16x16xf32>
    %34 = arith.subf %0, %33 : vector<16x16xf32>
    %35 = arith.mulf %34, %34 : vector<16x16xf32>
    %cst_12 = arith.constant dense<0.000000e+00> : vector<16xf32>
    %36 = vector.multi_reduction <add>, %35, %cst_12 [1] : vector<16x16xf32> to vector<16xf32>
    %37 = vector.shape_cast %36 : vector<16xf32> to vector<16x1xf32>
    %cst_13 = arith.constant 1.600000e+01 : f32
    %38 = vector.broadcast %cst_13 : f32 to vector<16x1xf32>
    %39 = arith.divf %37, %38 : vector<16x1xf32>
    %cst_14 = arith.constant 9.99999974E-6 : f32
    %40 = vector.broadcast %cst_14 : f32 to vector<16x1xf32>
    %41 = arith.addf %39, %40 : vector<16x1xf32>
    %42 = math.rsqrt %41 : vector<16x1xf32>
    %43 = arith.mulf %42, %27 : vector<16x1xf32>
    %44 = vector.broadcast %43 : vector<16x1xf32> to vector<16x16xf32>
    %45 = arith.mulf %34, %44 : vector<16x16xf32>
    %46 = vector.broadcast %28 : vector<16x1xf32> to vector<16x16xf32>
    %47 = arith.addf %45, %46 : vector<16x16xf32>
    %48 = vector.broadcast %3 : f32 to vector<16x16xf32>
    %49 = arith.mulf %0, %48 : vector<16x16xf32>
    %50 = vector.broadcast %4 : f32 to vector<16x16xf32>
    %51 = arith.mulf %26, %50 : vector<16x16xf32>
    %52 = arith.addf %49, %51 : vector<16x16xf32>
    %53 = vector.broadcast %5 : f32 to vector<16x16xf32>
    %54 = arith.mulf %47, %53 : vector<16x16xf32>
    %55 = arith.addf %52, %54 : vector<16x16xf32>
    %56 = vector.broadcast %6 : f32 to vector<16x16xf32>
    %57 = arith.addf %55, %56 : vector<16x16xf32>
    %c0_15 = arith.constant 0 : index
    %c0_16 = arith.constant 0 : index
    %58 = vector.load %arg6[%c0_15, %c0_16] : memref<16x16xf32, #tpu.memory_space<vmem>>, vector<16x16xf32>
    tpu.vector_store %arg6[%c0_15, %c0_16], %57 {strides = array<i32>} : memref<16x16xf32, #tpu.memory_space<vmem>>, vector<16x16xf32>,
    return
  }
}

</mosaic_0001>

<llo_original>
// kernel: tpu_custom_call.1
$region0: #{tpu_custom_call.1}
  #allocation0 [shape = 'u32[]', space=smem, size = 0x4, offset = 0x4, fixed_abs, tag = 'smem constant byte address 0x4 - core index']
  #allocation1 [shape = 'u32[72,128]{1,0:T(1,128)}', space=vmem, size = 0x9000, scoped, tag = 'internal scratch']
  %s0 = inlined_call_operand.vmem [shape: f32[6], index: 0, kind: input, shape index: {}]
  %s1 = inlined_call_operand.vmem [shape: f32[16,1], index: 1, kind: input, shape index: {}]
  %s2 = inlined_call_operand.vmem [shape: f32[16,1], index: 2, kind: input, shape index: {}]
  %s3 = inlined_call_operand.vmem [shape: f32[16,1], index: 3, kind: input, shape index: {}]
  %s4 = inlined_call_operand.vmem [shape: f32[16,1], index: 4, kind: input, shape index: {}]
  %s5 = inlined_call_operand.vmem [shape: f32[16,16], index: 5, kind: input, shape index: {}]
  %s6 = inlined_call_operand.hbm [shape: f32[16,16], index: 6, kind: output, shape index: {}]
  %s7 = sld [smem:[#allocation0]]
  $region38: #{tpu_custom_call.1} parent=0
    _
  %s9 = ssub.s32 1, %s7
  %s10 = scalar_select 0, %s9, %s7
  $region1: #{tpu_custom_call.1} parent=0
    #allocation2 [shape = 'u8[512]{0}', space=smem, size = 0x200, scoped, tag = 'input window, operand 0, single buffered']
    #allocation3 [shape = 's32[1]{0}', space=sflag, size = 0x4, scoped, tag = 'scoped memory for tpu_custom_call.1']
    #allocation4 [shape = 's32[1]{0}', space=sflag, size = 0x4, scoped, tag = 'scoped memory for tpu_custom_call.1']
    #allocation5 [shape = 'u8[8192]{0}', space=vmem, size = 0x2000, scoped, tag = 'output window, operand 0, single buffered']
    %11 = vsyncpa [#allocation4], 0
    %12 = vsyncpa [#allocation3], 0
    // Predicated region
    $region2: #{tpu_custom_call.1} parent=1 // pred_check
      _
    $region3: #{tpu_custom_call.1} parent=1 // pred_check_branch
      %14 = sbr.rel (0) target = $region5
    $region4: #{tpu_custom_call.1} parent=1 // pred_region
      %16 = vsyncadd [#allocation4], 0
      %s18 = sshll.u32 %s0, 4
      %s19 = int_to_ptr.vmem [resolvable:$true] %s18
      %21 = dma.vmem_to_smem %s19, 16, [#allocation2], [#allocation4]
    $region5: #{tpu_custom_call.1} parent=1 // pred_fallthru
      _
    // Predicated region
    $region6: #{tpu_custom_call.1} parent=1 // pred_check
      _
    $region7: #{tpu_custom_call.1} parent=1 // pred_check_branch
      %23 = sbr.rel (0) target = $region9
    $region8: #{tpu_custom_call.1} parent=1 // pred_region
      _
    $region9: #{tpu_custom_call.1} parent=1 // pred_fallthru
      _
    // Predicated region
    $region10: #{tpu_custom_call.1} parent=1 // pred_check
      _
    $region11: #{tpu_custom_call.1} parent=1 // pred_check_branch
      %25 = sbr.rel (0) target = $region13
    $region12: #{tpu_custom_call.1} parent=1 // pred_region
      _
    $region13: #{tpu_custom_call.1} parent=1 // pred_fallthru
      _
    // Predicated region
    $region14: #{tpu_custom_call.1} parent=1 // pred_check
      _
    $region15: #{tpu_custom_call.1} parent=1 // pred_check_branch
      %27 = sbr.rel (0) target = $region17
    $region16: #{tpu_custom_call.1} parent=1 // pred_region
      _
    $region17: #{tpu_custom_call.1} parent=1 // pred_fallthru
      _
    // Predicated region
    $region18: #{tpu_custom_call.1} parent=1 // pred_check
      _
    $region19: #{tpu_custom_call.1} parent=1 // pred_check_branch
      %29 = sbr.rel (0) target = $region21
    $region20: #{tpu_custom_call.1} parent=1 // pred_region
      _
    $region21: #{tpu_custom_call.1} parent=1 // pred_fallthru
      _
    // Predicated region
    $region22: #{tpu_custom_call.1} parent=1 // pred_check
      _
    $region23: #{tpu_custom_call.1} parent=1 // pred_check_branch
      %31 = sbr.rel (0) target = $region25
    $region24: #{tpu_custom_call.1} parent=1 // pred_region
      _
    $region25: #{tpu_custom_call.1} parent=1 // pred_fallthru
      _
    // Predicated region
    $region26: #{tpu_custom_call.1} parent=1 // pred_check
      _
    $region27: #{tpu_custom_call.1} parent=1 // pred_check_branch
      %33 = sbr.rel (0) target = $region29
    $region28: #{tpu_custom_call.1} parent=1 // pred_region
      %35 = dma.done [#allocation4], 16
    $region29: #{tpu_custom_call.1} parent=1 // pred_fallthru
      _
    %36 = sfence
    %v37 = vld [vmem:[%s5] sm:$0xff]
    %v38 = vld [vmem:[%s5 + $0x8] sm:$0xff]
    %s39 = sld [smem:[#allocation2]]
    %s40 = sld [smem:[#allocation2 + $0x1]]
    %s41 = sld [smem:[#allocation2 + $0x2]]
    %s42 = sld [smem:[#allocation2 + $0x3]]
    %s43 = sld [smem:[#allocation2 + $0x4]]
    %s44 = sld [smem:[#allocation2 + $0x5]]
    %vm45 = vcmask 130048
    %v46 = vsel %vm45, %v37, 0.0
    %v47 = vsel %vm45, %v38, 0.0
    %v48 = vadd.f32 %v46, %v47
    %v49 = vrot.slane %v48, 4
    %v50 = vadd.f32 %v48, %v49
    %v51 = vrot.slane %v50, 2
    %v52 = vadd.f32 %v50, %v51
    %v53 = vrot.slane %v52, 1
    %v54 = vadd.f32 %v52, %v53
    %v55 = vrcp.pop 16.0
    %v56 = vmul.f32 16.0, %v55
    %v57 = vsub.f32 1.0, %v56
    %v58 = vmul.f32 %v55, %v57
    %v59 = vadd.f32 %v55, %v58
    %vm60 = vweird.f32 %v55
    %v61 = vsel %vm60, %v55, %v59
    %v62 = vmul.f32 %v54, %v61
    %v63 = vsub.f32 %v37, %v62
    %v64 = vsub.f32 %v38, %v62
    %v65 = vmul.f32 %v63, %v63
    %v66 = vmul.f32 %v64, %v64
    %v67 = vsel %vm45, %v65, 0.0
    %v68 = vsel %vm45, %v66, 0.0
    %v69 = vadd.f32 %v67, %v68
    %v70 = vrot.slane %v69, 4
    %v71 = vadd.f32 %v69, %v70
    %v72 = vrot.slane %v71, 2
    %v73 = vadd.f32 %v71, %v72
    %v74 = vrot.slane %v73, 1
    %v75 = vadd.f32 %v73, %v74
    %v76 = vrcp.pop 15.0
    %v77 = vmul.f32 15.0, %v76
    %v78 = vsub.f32 1.0, %v77
    %v79 = vmul.f32 %v76, %v78
    %v80 = vadd.f32 %v76, %v79
    %vm81 = vweird.f32 %v76
    %v82 = vsel %vm81, %v76, %v80
    %v83 = vmul.f32 %v75, %v82
    %v84 = vadd.f32 %v83, 1e-05
    %v85 = vrsqrt.pop %v84
    %v86 = vmul.f32 %v85, %v84
    %v87 = vmul.f32 %v86, %v85
    %v88 = vmul.f32 0.5, %v87
    %v89 = vsub.f32 1.5, %v88
    %v90 = vmul.f32 %v85, %v89
    %vm91 = vweird.f32 %v84
    %vm92 = vweird.f32 %v85
    %vm93 = vmor %vm91, %vm92
    %v94 = vsel %vm93, %v85, %v90
    %v95 = vstv %s39
    %v96 = vmul.f32 %v94, %v95
    %v97 = vmul.f32 %v63, %v96
    %v98 = vmul.f32 %v64, %v96
    %v99 = vstv %s40
    %v100 = vadd.f32 %v97, %v99
    %v101 = vadd.f32 %v98, %v99
    %v102 = vld [vmem:[%s1] sm:$0xff]
    %v103 = vld [vmem:[%s1 + $0x8] sm:$0xff]
    %v104 = vld [vmem:[%s2] sm:$0xff]
    %v105 = vld [vmem:[%s2 + $0x8] sm:$0xff]
    %106 = vadd.xlane.f32.xlu0 %v46
    %v107 = vpop.xlane.xlu0 %106
    %108 = vadd.xlane.f32.xlu0 %v47
    %v109 = vpop.xlane.xlu0 %108
    %v110 = vmul.f32 %v107, %v61
    %v111 = vmul.f32 %v109, %v61
    %v112 = vsub.f32 %v37, %v110
    %v113 = vsub.f32 %v38, %v111
    %v114 = vmul.f32 %v112, %v112
    %v115 = vmul.f32 %v113, %v113
    %v116 = vsel %vm45, %v114, 0.0
    %117 = vadd.xlane.f32.xlu0 %v116
    %v118 = vpop.xlane.xlu0 %117
    %v119 = vsel %vm45, %v115, 0.0
    %120 = vadd.xlane.f32.xlu0 %v119
    %v121 = vpop.xlane.xlu0 %120
    %v122 = vmul.f32 %v118, %v61
    %v123 = vmul.f32 %v121, %v61
    %v124 = vadd.f32 %v122, 1e-05
    %v125 = vadd.f32 %v123, 1e-05
    %v126 = vrsqrt.pop %v124
    %v127 = vmul.f32 %v126, %v124
    %v128 = vmul.f32 %v127, %v126
    %v129 = vmul.f32 0.5, %v128
    %v130 = vsub.f32 1.5, %v129
    %v131 = vmul.f32 %v126, %v130
    %vm132 = vweird.f32 %v124
    %vm133 = vweird.f32 %v126
    %vm134 = vmor %vm132, %vm133
    %v135 = vsel %vm134, %v126, %v131
    %v136 = vrsqrt.pop %v125
    %v137 = vmul.f32 %v136, %v125
    %v138 = vmul.f32 %v137, %v136
    %v139 = vmul.f32 0.5, %v138
    %v140 = vsub.f32 1.5, %v139
    %v141 = vmul.f32 %v136, %v140
    %vm142 = vweird.f32 %v125
    %vm143 = vweird.f32 %v136
    %vm144 = vmor %vm142, %vm143
    %v145 = vsel %vm144, %v136, %v141
    %v146 = vmul.f32 %v135, %v102
    %v147 = vmul.f32 %v145, %v103
    %149 = vset.pattern.permute.xlu0 0
    %150 = vperm.xlu0 %149, %v146
    %v151 = vpop.permute.xlu0 %150
    %154 = vset.pattern.permute.xlu0 0
    %155 = vperm.xlu0 %154, %v147
    %v156 = vpop.permute.xlu0 %155
    %v158 = vmul.f32 %v112, %v151
    %v159 = vmul.f32 %v113, %v156
    %161 = vset.pattern.permute.xlu0 0
    %162 = vperm.xlu0 %161, %v104
    %v163 = vpop.permute.xlu0 %162
    %166 = vset.pattern.permute.xlu0 0
    %167 = vperm.xlu0 %166, %v105
    %v168 = vpop.permute.xlu0 %167
    %v170 = vadd.f32 %v158, %v163
    %v171 = vadd.f32 %v159, %v168
    %v172 = vstv %s41
    %v173 = vmul.f32 %v37, %v172
    %v174 = vmul.f32 %v38, %v172
    %v175 = vstv %s42
    %v176 = vmul.f32 %v100, %v175
    %v177 = vmul.f32 %v101, %v175
    %v178 = vadd.f32 %v173, %v176
    %v179 = vadd.f32 %v174, %v177
    %v180 = vstv %s43
    %v181 = vmul.f32 %v170, %v180
    %v182 = vmul.f32 %v171, %v180
    %v183 = vadd.f32 %v178, %v181
    %v184 = vadd.f32 %v179, %v182
    %v185 = vstv %s44
    %v186 = vadd.f32 %v183, %v185
    %v187 = vadd.f32 %v184, %v185
    %188 = vst.msk [vmem:[#allocation5] sm:$0xff] %vm45, %v186
    %189 = vst.msk [vmem:[#allocation5 + $0x8] sm:$0xff] %vm45, %v187
    // Predicated region
    $region30: #{tpu_custom_call.1} parent=1 // pred_check
      _
    $region31: #{tpu_custom_call.1} parent=1 // pred_check_branch
      %191 = sbr.rel (0) target = $region33
    $region32: #{tpu_custom_call.1} parent=1 // pred_region
      %193 = vsyncadd [#allocation3], 0
      %s194 = sshll.u32 [#allocation5], 4
      %s195 = int_to_ptr.vmem [resolvable:$true] %s194
      %s196 = sshll.u32 %s6, 4
      %s197 = int_to_ptr.hbm [resolvable:$true] %s196
      %202 = dma.vmem_to_hbm [thread:$0]  %s195, 256, %s197, [#allocation3], 128, 128, 8
    $region33: #{tpu_custom_call.1} parent=1 // pred_fallthru
      _
    // Predicated region
    $region34: #{tpu_custom_call.1} parent=1 // pred_check
      _
    $region35: #{tpu_custom_call.1} parent=1 // pred_check_branch
      %204 = sbr.rel (0) target = $region37
    $region36: #{tpu_custom_call.1} parent=1 // pred_region
      %206 = dma.done [#allocation3], 256
    $region37: #{tpu_custom_call.1} parent=1 // pred_fallthru
      _
    %207 = vsyncpa [#allocation3], 1
    %208 = vsyncpa [#allocation4], 1

</llo_original>
